<compile_context>
chip_gen: v5e
topology: v5e:2x2
jax: 0.10.0
libtpu: 0.0.40
codegen_flags: <defaults>
</compile_context>

<pallas_src>
import math
from functools import partial

import jax
import jax.numpy as jnp
from jax.experimental import pallas as pl
from jax.experimental.pallas import tpu as pltpu

PROB_MIN = 1e-7                          # torch.clamp(prob, min=1e-07, max=1.0)
ONEHOT_MIN = 1e-4                        # torch.clamp(one_hot, min=0.0001, max=1.0)
LOG_ONEHOT_MIN = math.log(ONEHOT_MIN)    # log of the clamped off-target one-hot value


def _round_up(a, b):
    return (a + b - 1) // b * b


def _rce_loss_kernel(x_ref, t_ref, loss_ref, *, n_valid, log_onehot_min):
    """One batch tile.  x_ref: (C, TM) logits^T, t_ref: (1, TM) int32 targets,
    loss_ref: (1, TM) per-row losses (lane-dense)."""
    i = pl.program_id(0)
    c, tm = x_ref.shape

    x = x_ref[...].astype(jnp.float32)                     # cast in-kernel
    tgt = t_ref[...]                                        # (1, TM) int32

    cls_id = jax.lax.broadcasted_iota(jnp.int32, (c, tm), 0)          # class idx
    col_id = jax.lax.broadcasted_iota(jnp.int32, (c, tm), 1) + i * tm  # batch idx

    # Softmax over the class (sublane) axis.
    m = jnp.max(x, axis=0, keepdims=True)                  # (1, TM)
    e = jnp.exp(x - m)                                     # (C, TM)
    s = jnp.sum(e, axis=0, keepdims=True)                  # (1, TM), >= 1
    inv_s = pl.reciprocal(s, approx=False)                 # exact: keeps 1e-5 tol
    prob = jnp.maximum(e * inv_s, PROB_MIN)                # max=1.0 clamp is a no-op

    # log(clamp(one_hot(target), 1e-4, 1.0)) is two-valued: 0 on the target
    # class, log(1e-4) elsewhere.  Fused with the batch-tail mask into one
    # select; this mask must stay before the reduction (padded tail -> 0).
    scale = jnp.where((cls_id != tgt) & (col_id < n_valid),
                      log_onehot_min, 0.0)                 # (C, TM)

    loss_ref[...] = -jnp.sum(prob * scale, axis=0, keepdims=True)   # (1, TM)


def rce_loss(x, target, num_classes=10, reduction="mean", tm=None):
    """Pallas RCELoss.  x: [N, num_classes] float logits, target: [N] int labels."""
    n, c = x.shape
    assert c == num_classes, "logit width must equal num_classes"

    # Batch tile (lanes): big tiles amortize per-grid-step overhead; tiles are
    # tiny ((C_sublane_pad, TM) f32) so no per-generation VMEM concern.
    if tm is None:
        tm = min(2048, _round_up(n, 128))
    tm = _round_up(tm, 128)
    n_pad = _round_up(n, tm)

    # Classes-on-sublanes / batch-on-lanes layout.  The transpose + small batch
    # pad is an unpadded (N, C) pass -- far cheaper than the previous padded
    # (N_pad, 128) copy.  Zero-padded tail columns are finite through softmax
    # and are zeroed by the in-kernel mask.
    xt = jnp.pad(x.T, ((0, 0), (0, n_pad - n)))                       # (C, n_pad)
    t2 = jnp.pad(target.astype(jnp.int32), (0, n_pad - n)).reshape(1, n_pad)

    kernel = partial(_rce_loss_kernel, n_valid=n, log_onehot_min=LOG_ONEHOT_MIN)

    cost = pl.CostEstimate(
        flops=int(8 * n * c),
        transcendentals=int(n * c),
        bytes_accessed=int(n * c * x.dtype.itemsize + n * 4 + n * 4),
    )

    rows = pl.pallas_call(
        kernel,
        out_shape=jax.ShapeDtypeStruct((1, n_pad), jnp.float32),
        grid_spec=pltpu.PrefetchScalarGridSpec(
            num_scalar_prefetch=0,
            grid=(n_pad // tm,),
            in_specs=[
                pl.BlockSpec((c, tm), lambda i: (0, i)),    # logits^T tile
                pl.BlockSpec((1, tm), lambda i: (0, i)),    # targets row
            ],
            out_specs=pl.BlockSpec((1, tm), lambda i: (0, i)),   # per-row losses
        ),
        # No in-kernel reduction across grid steps: the batch axis is truly
        # independent, so both TensorCores on v7x can split it.
        compiler_params=pltpu.CompilerParams(
            dimension_semantics=("parallel",)),
        cost_estimate=cost,
    )(xt, t2)

    if reduction == "mean":
        # Padded-tail lanes are zeroed in-kernel, so sum(all) / n == row mean.
        return jnp.sum(rows) * (1.0 / n)
    return rows[0, :n]                        # reduction='none'


def reference_rce_loss(x, target, num_classes=10, reduction="mean"):
    """Pure-JAX reference mirroring the PyTorch RCELoss.forward."""
    prob = jax.nn.softmax(x.astype(jnp.float32), axis=-1)
    prob = jnp.clip(prob, PROB_MIN, 1.0)
    one_hot = jax.nn.one_hot(target, num_classes, dtype=jnp.float32)
    one_hot = jnp.clip(one_hot, ONEHOT_MIN, 1.0)
    loss = -jnp.sum(prob * jnp.log(one_hot), axis=-1)
    if reduction == "mean":
        loss = loss.mean()
    return loss


if __name__ == "__main__":
    NUM_CLASSES = 10
    key = jax.random.PRNGKey(0)
    kx, kt, kx2, kt2 = jax.random.split(key, 4)

    # Small case (single batch tile, tail mask exercised: N=12 < TM=128).
    N = 12
    x = jax.random.normal(kx, (N, NUM_CLASSES), jnp.float32)
    target = jax.random.randint(kt, (N,), 0, NUM_CLASSES, dtype=jnp.int32)

    loss = jax.block_until_ready(rce_loss(x, target, NUM_CLASSES, "mean"))
    ref = reference_rce_loss(x, target, NUM_CLASSES, "mean")
    assert loss.shape == ()
    assert jnp.allclose(loss, ref, atol=1e-5, rtol=1e-5), (loss, ref)

    loss_none = jax.block_until_ready(rce_loss(x, target, NUM_CLASSES, "none"))
    ref_none = reference_rce_loss(x, target, NUM_CLASSES, "none")
    assert loss_none.shape == (N,)
    assert jnp.allclose(loss_none, ref_none, atol=1e-5, rtol=1e-5)

    # Multi-tile case (forces grid=2 with tm=128; exercises the parallel grid
    # axis and the batch-tail mask in the last tile).
    N2 = 200
    x2 = jax.random.normal(kx2, (N2, NUM_CLASSES), jnp.float32)
    target2 = jax.random.randint(kt2, (N2,), 0, NUM_CLASSES, dtype=jnp.int32)

    loss2 = jax.block_until_ready(rce_loss(x2, target2, NUM_CLASSES, "mean", tm=128))
    ref2 = reference_rce_loss(x2, target2, NUM_CLASSES, "mean")
    assert jnp.allclose(loss2, ref2, atol=1e-5, rtol=1e-5), (loss2, ref2)

    loss2_none = jax.block_until_ready(
        rce_loss(x2, target2, NUM_CLASSES, "none", tm=128))
    ref2_none = reference_rce_loss(x2, target2, NUM_CLASSES, "none")
    assert jnp.allclose(loss2_none, ref2_none, atol=1e-5, rtol=1e-5)

    print("KERNEL_OK")
</pallas_src>

<mosaic_0001>
module attributes {stable_mosaic.version = 11 : i64} {
  func.func @_rce_loss_kernel(%arg0: i32, %arg1: memref<10x128xf32, #tpu.memory_space<vmem>>, %arg2: memref<1x128xi32, #tpu.memory_space<vmem>>, %arg3: memref<1x128xf32, #tpu.memory_space<vmem>>) attributes {dimension_semantics = [#tpu.dimension_semantics<parallel>], iteration_bounds = array<i64: 1>, scalar_prefetch = 0 : i64, scratch_operands = 0 : i64, tpu.core_type = #tpu.core_type<tc>, window_params = [{transform_indices = @transform_0, window_bounds = array<i64: 10, 128>}, {transform_indices = @transform_1, window_bounds = array<i64: 1, 128>}, {transform_indices = @transform_2, window_bounds = array<i64: 1, 128>}]} {
    %c0 = arith.constant 0 : index
    %c0_0 = arith.constant 0 : index
    %0 = vector.load %arg1[%c0, %c0_0] : memref<10x128xf32, #tpu.memory_space<vmem>>, vector<10x128xf32>
    %c0_1 = arith.constant 0 : index
    %c0_2 = arith.constant 0 : index
    %1 = vector.load %arg2[%c0_1, %c0_2] : memref<1x128xi32, #tpu.memory_space<vmem>>, vector<1x128xi32>
    %2 = tpu.iota {dimensions = array<i32: 0>} : vector<10x128xi32>
    %3 = tpu.iota {dimensions = array<i32: 1>} : vector<10x128xi32>
    %c128_i32 = arith.constant 128 : i32
    %4 = arith.muli %arg0, %c128_i32 : i32
    %5 = vector.broadcast %4 : i32 to vector<10x128xi32>
    %6 = arith.addi %3, %5 : vector<10x128xi32>
    %cst = arith.constant dense<0xFF800000> : vector<128xf32>
    %7 = vector.multi_reduction <maximumf>, %0, %cst [0] : vector<10x128xf32> to vector<128xf32>
    %8 = vector.shape_cast %7 : vector<128xf32> to vector<1x128xf32>
    %9 = vector.broadcast %8 : vector<1x128xf32> to vector<10x128xf32>
    %10 = arith.subf %0, %9 : vector<10x128xf32>
    %11 = math.exp %10 : vector<10x128xf32>
    %cst_3 = arith.constant dense<0.000000e+00> : vector<128xf32>
    %12 = vector.multi_reduction <add>, %11, %cst_3 [0] : vector<10x128xf32> to vector<128xf32>
    %13 = vector.shape_cast %12 : vector<128xf32> to vector<1x128xf32>
    %14 = tpu.reciprocal %13 : vector<1x128xf32> -> vector<1x128xf32>
    %15 = vector.broadcast %14 : vector<1x128xf32> to vector<10x128xf32>
    %16 = arith.mulf %11, %15 : vector<10x128xf32>
    %cst_4 = arith.constant 1.000000e-07 : f32
    %17 = vector.broadcast %cst_4 : f32 to vector<10x128xf32>
    %18 = arith.maximumf %16, %17 : vector<10x128xf32>
    %19 = vector.broadcast %1 : vector<1x128xi32> to vector<10x128xi32>
    %20 = arith.cmpi ne, %2, %19 : vector<10x128xi32>
    %c12_i32 = arith.constant 12 : i32
    %21 = vector.broadcast %c12_i32 : i32 to vector<10x128xi32>
    %22 = arith.cmpi slt, %6, %21 : vector<10x128xi32>
    %23 = arith.andi %20, %22 : vector<10x128xi1>
    %cst_5 = arith.constant -9.21034049 : f32
    %cst_6 = arith.constant 0.000000e+00 : f32
    %24 = vector.broadcast %cst_5 : f32 to vector<10x128xf32>
    %25 = vector.broadcast %cst_6 : f32 to vector<10x128xf32>
    %26 = arith.select %23, %24, %25 : vector<10x128xi1>, vector<10x128xf32>
    %27 = arith.mulf %18, %26 : vector<10x128xf32>
    %cst_7 = arith.constant dense<0.000000e+00> : vector<128xf32>
    %28 = vector.multi_reduction <add>, %27, %cst_7 [0] : vector<10x128xf32> to vector<128xf32>
    %29 = vector.shape_cast %28 : vector<128xf32> to vector<1x128xf32>
    %cst_8 = arith.constant 0.000000e+00 : f32
    %30 = vector.broadcast %cst_8 : f32 to vector<1x128xf32>
    %31 = arith.subf %30, %29 : vector<1x128xf32>
    %c0_9 = arith.constant 0 : index
    %c0_10 = arith.constant 0 : index
    %32 = vector.load %arg3[%c0_9, %c0_10] : memref<1x128xf32, #tpu.memory_space<vmem>>, vector<1x128xf32>
    tpu.vector_store %arg3[%c0_9, %c0_10], %31 {strides = array<i32>} : memref<1x128xf32, #tpu.memory_space<vmem>>, vector<1x128xf32>,
    return
  }
  func.func @transform_0(%arg0: i32) -> (i32, i32) {
    %c0_i32 = arith.constant 0 : i32
    %c0_i32_0 = arith.constant 0 : i32
    return %c0_i32, %arg0 : i32, i32
  }
  func.func @transform_1(%arg0: i32) -> (i32, i32) {
    %c0_i32 = arith.constant 0 : i32
    %c0_i32_0 = arith.constant 0 : i32
    return %c0_i32, %arg0 : i32, i32
  }
  func.func @transform_2(%arg0: i32) -> (i32, i32) {
    %c0_i32 = arith.constant 0 : i32
    %c0_i32_0 = arith.constant 0 : i32
    return %c0_i32, %arg0 : i32, i32
  }
}

</mosaic_0001>

<llo_original>
// kernel: tpu_custom_call.1
$region0: #{tpu_custom_call.1}
  #allocation0 [shape = 'u32[]', space=smem, size = 0x4, offset = 0x4, fixed_abs, tag = 'smem constant byte address 0x4 - core index']
  #allocation1 [shape = 'u32[72,128]{1,0:T(1,128)}', space=vmem, size = 0x9000, scoped, tag = 'internal scratch']
  %s0 = inlined_call_operand.hbm [shape: f32[10,128], index: 0, kind: input, shape index: {}]
  %s1 = inlined_call_operand.hbm [shape: s32[1,128], index: 1, kind: input, shape index: {}]
  %s2 = inlined_call_operand.hbm [shape: f32[1,128], index: 2, kind: output, shape index: {}]
  %s3 = sld [smem:[#allocation0]]
  $region26: #{tpu_custom_call.1} parent=0
    _
  %s5 = ssub.s32 1, %s3
  %s6 = scalar_select 0, %s5, %s3
  $region1: #{tpu_custom_call.1} parent=0
    #allocation2 [shape = 'u8[8192]{0}', space=vmem, size = 0x2000, scoped, tag = 'input window, operand 0, single buffered']
    #allocation3 [shape = 's32[1]{0}', space=sflag, size = 0x4, scoped, tag = 'scoped memory for tpu_custom_call.1']
    #allocation4 [shape = 's32[1]{0}', space=sflag, size = 0x4, scoped, tag = 'scoped memory for tpu_custom_call.1']
    #allocation5 [shape = 'u8[512]{0}', space=vmem, size = 0x400, scoped, tag = 'input window, operand 1, single buffered']
    #allocation6 [shape = 's32[1]{0}', space=sflag, size = 0x4, scoped, tag = 'scoped memory for tpu_custom_call.1']
    #allocation7 [shape = 'u8[512]{0}', space=vmem, size = 0x400, scoped, tag = 'output window, operand 0, single buffered']
    %7 = vsyncpa [#allocation3], 0
    %8 = vsyncpa [#allocation6], 0
    %9 = vsyncpa [#allocation4], 0
    // Predicated region
    $region2: #{tpu_custom_call.1} parent=1 // pred_check
      _
    $region3: #{tpu_custom_call.1} parent=1 // pred_check_branch
      %11 = sbr.rel (0) target = $region5
    $region4: #{tpu_custom_call.1} parent=1 // pred_region
      %13 = vsyncadd [#allocation3], 0
      %s14 = sshll.u32 %s0, 4
      %s15 = int_to_ptr.hbm [resolvable:$true] %s14
      %s16 = sshll.u32 [#allocation2], 4
      %s17 = int_to_ptr.vmem [resolvable:$true] %s16
      %22 = dma.hbm_to_vmem [thread:$0]  %s15, 256, %s17, [#allocation3], 128, 128, 8
    $region5: #{tpu_custom_call.1} parent=1 // pred_fallthru
      _
    // Predicated region
    $region6: #{tpu_custom_call.1} parent=1 // pred_check
      _
    $region7: #{tpu_custom_call.1} parent=1 // pred_check_branch
      %24 = sbr.rel (0) target = $region9
    $region8: #{tpu_custom_call.1} parent=1 // pred_region
      %26 = vsyncadd [#allocation6], 0
      %s28 = sshll.u32 %s1, 4
      %s29 = int_to_ptr.hbm [resolvable:$true] %s28
      %s30 = sshll.u32 [#allocation5], 4
      %s31 = int_to_ptr.vmem [resolvable:$true] %s30
      %33 = dma.hbm_to_vmem [thread:$0]  %s29, 16, %s31, [#allocation6]
    $region9: #{tpu_custom_call.1} parent=1 // pred_fallthru
      _
    // Predicated region
    $region10: #{tpu_custom_call.1} parent=1 // pred_check
      _
    $region11: #{tpu_custom_call.1} parent=1 // pred_check_branch
      %35 = sbr.rel (0) target = $region13
    $region12: #{tpu_custom_call.1} parent=1 // pred_region
      %37 = dma.done [#allocation3], 256
    $region13: #{tpu_custom_call.1} parent=1 // pred_fallthru
      _
    // Predicated region
    $region14: #{tpu_custom_call.1} parent=1 // pred_check
      _
    $region15: #{tpu_custom_call.1} parent=1 // pred_check_branch
      %39 = sbr.rel (0) target = $region17
    $region16: #{tpu_custom_call.1} parent=1 // pred_region
      %41 = dma.done [#allocation6], 16
    $region17: #{tpu_custom_call.1} parent=1 // pred_fallthru
      _
    %v42 = vld [vmem:[#allocation2] sm:$0xff]
    %v43 = vld [vmem:[#allocation2 + $0x8] sm:$0x3]
    %v44 = vld [vmem:[#allocation5] sm:$0x1]
    %v45 = vlaneseq
    %v46 = vshrl.u32 %v45, 7
    %v47 = vadd.s32 %v46, 8
    %v48 = vlaneseq
    %v49 = vand.u32 %v48, 127
    %s50 = smul.u32 0, 128
    %v51 = vstv %s50
    %v52 = vadd.s32 %v49, %v51
    %vm53 = vcmask 1041408
    %v54 = vsel %vm53, %v43, -inf
    %v55 = vmax.f32 %v42, %v54
    %v56 = vrot.slane %v55, 4
    %v57 = vmax.f32 %v55, %v56
    %v58 = vrot.slane %v57, 2
    %v59 = vmax.f32 %v57, %v58
    %v60 = vrot.slane %v59, 1
    %v61 = vmax.f32 %v59, %v60
    %v62 = vsub.f32 %v42, %v61
    %v63 = vsub.f32 %v43, %v61
    %v64 = vmul.f32 %v62, 1.442695
    %v65 = vpow.pop %v64
    %v66 = vmul.f32 %v63, 1.442695
    %v67 = vpow.pop %v66
    %v68 = vsel %vm53, %v67, 0.0
    %v69 = vadd.f32 %v65, %v68
    %v70 = vrot.slane %v69, 4
    %v71 = vadd.f32 %v69, %v70
    %v72 = vrot.slane %v71, 2
    %v73 = vadd.f32 %v71, %v72
    %v74 = vrot.slane %v73, 1
    %v75 = vadd.f32 %v73, %v74
    %v76 = vrcp.pop %v75
    %v77 = vmul.f32 %v75, %v76
    %v78 = vsub.f32 1.0, %v77
    %v79 = vmul.f32 %v76, %v78
    %v80 = vadd.f32 %v76, %v79
    %vm81 = vweird.f32 %v75
    %vm82 = vweird.f32 %v76
    %vm83 = vmor %vm81, %vm82
    %v84 = vsel %vm83, %v76, %v80
    %v85 = vand.u32 2147483647, %v75
    %vm86 = vcmp.eq.f32.partialorder %v85, 8.507059e+37
    %v87 = vand.u32 %v75, 2147483648
    %v88 = vor.u32 1.1754944e-38, %v87
    %v89 = vsel %vm86, %v88, %v84
    %v90 = vmul.f32 %v65, %v89
    %v91 = vmul.f32 %v67, %v89
    %v92 = vmax.f32 %v90, 1e-07
    %v93 = vmax.f32 %v91, 1e-07
    %v94 = vperm.slane %v44, 0
    %vm95 = vcmp.ne.s32.totalorder %v46, %v94
    %vm96 = vcmp.ne.s32.totalorder %v47, %v94
    %vm97 = vcmp.lt.s32.totalorder %v52, 12
    %vm98 = vmand %vm95, %vm97
    %vm99 = vmand %vm96, %vm97
    %v100 = vsel %vm98, -9.2103405, 0.0
    %v101 = vsel %vm99, -9.2103405, 0.0
    %v102 = vmul.f32 %v92, %v100
    %v103 = vmul.f32 %v93, %v101
    %v104 = vsel %vm53, %v103, 0.0
    %v105 = vadd.f32 %v102, %v104
    %v106 = vrot.slane %v105, 4
    %v107 = vadd.f32 %v105, %v106
    %v108 = vrot.slane %v107, 2
    %v109 = vadd.f32 %v107, %v108
    %v110 = vrot.slane %v109, 1
    %v111 = vadd.f32 %v109, %v110
    %v112 = vsub.f32 0.0, %v111
    %113 = vst [vmem:[#allocation7] sm:$0x1] %v112
    // Predicated region
    $region18: #{tpu_custom_call.1} parent=1 // pred_check
      _
    $region19: #{tpu_custom_call.1} parent=1 // pred_check_branch
      %115 = sbr.rel (0) target = $region21
    $region20: #{tpu_custom_call.1} parent=1 // pred_region
      %117 = vsyncadd [#allocation4], 0
      %s119 = sshll.u32 [#allocation7], 4
      %s120 = int_to_ptr.vmem [resolvable:$true] %s119
      %s121 = sshll.u32 %s2, 4
      %s122 = int_to_ptr.hbm [resolvable:$true] %s121
      %124 = dma.vmem_to_hbm [thread:$0]  %s120, 16, %s122, [#allocation4]
    $region21: #{tpu_custom_call.1} parent=1 // pred_fallthru
      _
    // Predicated region
    $region22: #{tpu_custom_call.1} parent=1 // pred_check
      _
    $region23: #{tpu_custom_call.1} parent=1 // pred_check_branch
      %126 = sbr.rel (0) target = $region25
    $region24: #{tpu_custom_call.1} parent=1 // pred_region
      %128 = dma.done [#allocation4], 16
    $region25: #{tpu_custom_call.1} parent=1 // pred_fallthru
      _
    %129 = vsyncpa [#allocation3], 1
    %130 = vsyncpa [#allocation6], 1
    %131 = vsyncpa [#allocation4], 1

</llo_original>
